<compile_context>
chip_gen: v6e
topology: v6e:2x2x1
jax: 0.10.0
libtpu: 0.0.40
codegen_flags: <defaults>
</compile_context>

<pallas_src>
import functools

import jax
import jax.numpy as jnp
from jax.experimental import pallas as pl
from jax.experimental.pallas import tpu as pltpu


# ----------------------------------------------------------------------------
# Kernels
# ----------------------------------------------------------------------------
def _matmul_kernel_acc(x_ref, w_ref, o_ref, acc_ref):
    """One (tm, tn) output tile; accumulates over the K grid axis (axis 2)."""

    @pl.when(pl.program_id(2) == 0)
    def _():
        acc_ref[...] = jnp.zeros_like(acc_ref)

    acc_ref[...] += jnp.dot(
        x_ref[...], w_ref[...], preferred_element_type=jnp.float32
    )

    @pl.when(pl.program_id(2) == pl.num_programs(2) - 1)
    def _():
        o_ref[...] = acc_ref[...].astype(o_ref.dtype)


def _matmul_kernel_single_k(x_ref, w_ref, o_ref):
    """Whole K in one step: no accumulator scratch, write the tile directly."""
    o_ref[...] = jnp.dot(
        x_ref[...], w_ref[...], preferred_element_type=jnp.float32
    ).astype(o_ref.dtype)


# ----------------------------------------------------------------------------
# Tile selection helpers (plain Python on concrete shapes, outside jit)
# ----------------------------------------------------------------------------
_TM_MAX = 1024          # output-tile rows cap
_TN_MAX = 1024          # output-tile cols cap (lane-dense multiples of 128)
_TK_MAX = 2048          # contraction tile cap (full K preferred when it fits)
_WS_BUDGET = 44 * 1024 * 1024       # double-buffered working-set budget
_VMEM_LIMIT_MIN = 32 * 1024 * 1024  # >= default scoped VMEM on v6e/v7x
_VMEM_LIMIT_MAX = 56 * 1024 * 1024  # safe under v7x's 64 MiB physical VMEM


def _round_up(x: int, m: int) -> int:
    return ((x + m - 1) // m) * m


def _cdiv(a: int, b: int) -> int:
    return -(-a // b)


def _pick_dim_tile(dim: int, align: int, max_tile: int) -> int:
    """Tile for one dimension.

    If the whole dim fits under `max_tile`, use it verbatim (block_shape equal
    to the full array dim is always legal -> zero padding).  Otherwise pick the
    aligned tile <= max_tile with minimal round-up waste, preferring the
    largest such tile (better arithmetic intensity).
    """
    if dim <= max_tile:
        return dim
    best_t = align
    best_waste = _round_up(dim, align) - dim
    for t in range(align, max_tile + 1, align):
        waste = _round_up(dim, t) - dim
        if waste < best_waste or (waste == best_waste and t > best_t):
            best_waste, best_t = waste, t
    return best_t


def _ensure_parallel_split(M: int, N: int, tm: int, tn: int, align_m: int):
    """Make sure the parallel (i, j) grid has >= 2 tiles (v7x has 2 TCs)."""
    if _cdiv(M, tm) * _cdiv(N, tn) >= 2:
        return tm, tn
    # Prefer splitting M (keeps the output tile lane-dense along N).
    if M >= 2 * align_m:
        tm2 = _pick_dim_tile(M, align_m, _round_up(_cdiv(M, 2), align_m))
        if _cdiv(M, tm2) >= 2:
            return tm2, tn
    if N >= 2 * 128:
        tn2 = _pick_dim_tile(N, 128, _round_up(_cdiv(N, 2), 128))
        if _cdiv(N, tn2) >= 2:
            return tm, tn2
    return tm, tn


def _working_set_bytes(tm: int, tn: int, tk: int, itemsize: int) -> int:
    return (
        2 * tm * tk * itemsize   # x tile, double-buffered
        + 2 * tk * tn * itemsize  # w tile, double-buffered
        + 2 * tm * tn * itemsize  # out tile, double-buffered
        + tm * tn * 4             # f32 accumulator scratch
    )


def _fit_budget(tm: int, tn: int, tk: int, itemsize: int, align_m: int,
                budget: int):
    """Shrink tiles until the working set fits.  K first (it does not change
    HBM operand traffic), then N, then M."""

    def shrink(t: int, align: int) -> int:
        return max(align, ((t // 2) // align) * align)

    while _working_set_bytes(tm, tn, tk, itemsize) > budget:
        if tk > 128:
            tk = shrink(tk, 128)
        elif tn > 128:
            tn = shrink(tn, 128)
        elif tm > align_m:
            tm = shrink(tm, align_m)
        else:
            break
    return tm, tn, tk


# ----------------------------------------------------------------------------
# pallas_call wrapper
# ----------------------------------------------------------------------------
@functools.partial(jax.jit, static_argnames=("tm", "tn", "tk", "vmem_limit"))
def _dense_impl(x, weights, tm, tn, tk, vmem_limit):
    M, K = x.shape
    _, N = weights.shape

    Mp = _round_up(M, tm)
    Kp = _round_up(K, tk)
    Np = _round_up(N, tn)

    # Zero-padding is exact for matmul; only pad the operands that need it.
    x_p = x if (Mp == M and Kp == K) else jnp.pad(
        x, ((0, Mp - M), (0, Kp - K)))
    w_p = weights if (Kp == K and Np == N) else jnp.pad(
        weights, ((0, Kp - K), (0, Np - N)))

    k_steps = Kp // tk
    out_shape = jax.ShapeDtypeStruct((Mp, Np), x.dtype)
    compiler_params = pltpu.CompilerParams(
        dimension_semantics=(
            ("parallel", "parallel") if k_steps == 1
            else ("parallel", "parallel", "arbitrary")
        ),
        vmem_limit_bytes=vmem_limit,
    )

    if k_steps == 1:
        # Whole contraction in one step: no accumulator scratch needed.
        out_p = pl.pallas_call(
            _matmul_kernel_single_k,
            out_shape=out_shape,
            grid_spec=pltpu.PrefetchScalarGridSpec(
                num_scalar_prefetch=0,
                grid=(Mp // tm, Np // tn),
                in_specs=[
                    pl.BlockSpec((tm, tk), lambda i, j: (i, 0)),
                    pl.BlockSpec((tk, tn), lambda i, j: (0, j)),
                ],
                out_specs=pl.BlockSpec((tm, tn), lambda i, j: (i, j)),
            ),
            compiler_params=compiler_params,
        )(x_p, w_p)
    else:
        out_p = pl.pallas_call(
            _matmul_kernel_acc,
            out_shape=out_shape,
            grid_spec=pltpu.PrefetchScalarGridSpec(
                num_scalar_prefetch=0,
                grid=(Mp // tm, Np // tn, k_steps),
                in_specs=[
                    pl.BlockSpec((tm, tk), lambda i, j, k: (i, k)),
                    pl.BlockSpec((tk, tn), lambda i, j, k: (k, j)),
                ],
                out_specs=pl.BlockSpec((tm, tn), lambda i, j, k: (i, j)),
                scratch_shapes=[pltpu.VMEM((tm, tn), jnp.float32)],
            ),
            compiler_params=compiler_params,
        )(x_p, w_p)

    if Mp == M and Np == N:
        return out_p
    return out_p[:M, :N]


def dense(x: jax.Array, weights: jax.Array) -> jax.Array:
    """out = x @ weights, same semantics as torch.mm(x, weights)."""
    M, K = x.shape
    K2, N = weights.shape
    assert K == K2, f"inner dims mismatch: {K} vs {K2}"

    itemsize = jnp.dtype(x.dtype).itemsize
    # dtype-aware sublane packing: 8 rows for f32, 16 for bf16, 32 for int8.
    align_m = max(8, 32 // itemsize)

    tm = _pick_dim_tile(M, align_m, _TM_MAX)
    tn = _pick_dim_tile(N, 128, _TN_MAX)
    tk = _pick_dim_tile(K, 128, _TK_MAX)

    # Give both v7x TensorCores work when the parallel grid would be 1 tile.
    tm, tn = _ensure_parallel_split(M, N, tm, tn, align_m)
    # Enforce the double-buffered VMEM working-set budget.
    tm, tn, tk = _fit_budget(tm, tn, tk, itemsize, align_m, _WS_BUDGET)

    ws = _working_set_bytes(tm, tn, tk, itemsize)
    vmem_limit = int(
        min(_VMEM_LIMIT_MAX, max(_VMEM_LIMIT_MIN, ws + 8 * 1024 * 1024))
    )

    return _dense_impl(x, weights, tm, tn, tk, vmem_limit)


if __name__ == "__main__":
    # Dense(n1=32, n2=16); x: (batch=8, n1=32) — small shapes per the module.
    n1, n2 = 32, 16
    batch = 8

    key = jax.random.PRNGKey(0)
    kx, kw = jax.random.split(key)

    x = jax.random.normal(kx, (batch, n1), dtype=jnp.float32)
    # nn.init.normal_(weights, mean=0, std=0.01)
    weights = 0.01 * jax.random.normal(kw, (n1, n2), dtype=jnp.float32)

    out = dense(x, weights)
    jax.block_until_ready(out)

    ref = x @ weights
    assert out.shape == (batch, n2)
    assert jnp.allclose(out, ref, atol=1e-5, rtol=1e-5)

    # A larger non-power-of-two shape exercising the tiled path: tn=384 (no
    # padding), tk=full K, tm split to 256 so the parallel grid has 2 tiles.
    M2, K2_, N2 = 512, 1024, 384
    xb = jax.random.normal(jax.random.PRNGKey(1), (M2, K2_), dtype=jnp.float32)
    wb = 0.01 * jax.random.normal(
        jax.random.PRNGKey(2), (K2_, N2), dtype=jnp.float32
    )
    out2 = dense(xb, wb)
    jax.block_until_ready(out2)
    ref2 = xb @ wb
    assert out2.shape == (M2, N2)
    assert jnp.allclose(out2, ref2, atol=1e-4, rtol=1e-4)

    print("KERNEL_OK")
</pallas_src>

<mosaic_0001>
module attributes {stable_mosaic.version = 11 : i64} {
  func.func @_matmul_kernel_single_k(%arg0: i32, %arg1: i32, %arg2: memref<8x32xf32, #tpu.memory_space<vmem>>, %arg3: memref<32x16xf32, #tpu.memory_space<vmem>>, %arg4: memref<8x16xf32, #tpu.memory_space<vmem>>) attributes {dimension_semantics = [#tpu.dimension_semantics<parallel>, #tpu.dimension_semantics<parallel>], iteration_bounds = array<i64: 1, 1>, scalar_prefetch = 0 : i64, scratch_operands = 0 : i64, tpu.core_type = #tpu.core_type<tc>, window_params = [{transform_indices = @transform_0, window_bounds = array<i64: 8, 32>}, {transform_indices = @transform_1, window_bounds = array<i64: 32, 16>}, {transform_indices = @transform_2, window_bounds = array<i64: 8, 16>}]} {
    %c0 = arith.constant 0 : index
    %c0_0 = arith.constant 0 : index
    %0 = vector.load %arg2[%c0, %c0_0] : memref<8x32xf32, #tpu.memory_space<vmem>>, vector<8x32xf32>
    %c0_1 = arith.constant 0 : index
    %c0_2 = arith.constant 0 : index
    %1 = vector.load %arg3[%c0_1, %c0_2] : memref<32x16xf32, #tpu.memory_space<vmem>>, vector<32x16xf32>
    %cst = arith.constant dense<0.000000e+00> : vector<8x16xf32>
    %2 = tpu.matmul %0, %1, %cst {dimension_numbers = #tpu.dot_dimension_numbers<[1], [0], [0], [1], [0, 0, 1, 1], [], []>} : vector<8x32xf32>, vector<32x16xf32>, vector<8x16xf32> -> vector<8x16xf32>
    %c0_3 = arith.constant 0 : index
    %c0_4 = arith.constant 0 : index
    %3 = vector.load %arg4[%c0_3, %c0_4] : memref<8x16xf32, #tpu.memory_space<vmem>>, vector<8x16xf32>
    tpu.vector_store %arg4[%c0_3, %c0_4], %2 {strides = array<i32>} : memref<8x16xf32, #tpu.memory_space<vmem>>, vector<8x16xf32>,
    return
  }
  func.func @transform_0(%arg0: i32, %arg1: i32) -> (i32, i32) {
    %c0_i32 = arith.constant 0 : i32
    %c0_i32_0 = arith.constant 0 : i32
    return %arg0, %c0_i32 : i32, i32
  }
  func.func @transform_1(%arg0: i32, %arg1: i32) -> (i32, i32) {
    %c0_i32 = arith.constant 0 : i32
    %c0_i32_0 = arith.constant 0 : i32
    return %c0_i32, %arg1 : i32, i32
  }
  func.func @transform_2(%arg0: i32, %arg1: i32) -> (i32, i32) {
    %c0_i32 = arith.constant 0 : i32
    return %arg0, %arg1 : i32, i32
  }
}

</mosaic_0001>

<llo_original>
// kernel: _dense_impl.1
$region0: #{_dense_impl.1}
  #allocation0 [shape = 'u32[]', space=smem, size = 0x4, offset = 0x4, fixed_abs, tag = 'smem constant byte address 0x4 - core index']
  #allocation1 [shape = 'u32[144,128]{1,0:T(1,128)}', space=vmem, size = 0x12000, scoped, tag = 'internal scratch']
  %s0 = inlined_call_operand.vmem [shape: f32[8,32], index: 0, kind: input, shape index: {}]
  %s1 = inlined_call_operand.vmem [shape: f32[32,16], index: 1, kind: input, shape index: {}]
  %s2 = inlined_call_operand.hbm [shape: f32[8,16], index: 2, kind: output, shape index: {}]
  %s3 = sld [smem:[#allocation0]]
  $region18: #{_dense_impl.1} parent=0
    _
  %s5 = ssub.s32 1, %s3
  %s6 = scalar_select 0, %s5, %s3
  $region1: #{_dense_impl.1} parent=0
    #allocation2 [shape = 'u8[4096]{0}', space=vmem, size = 0x1000, scoped, tag = 'output window, operand 0, single buffered']
    #allocation3 [shape = 's32[1]{0}', space=sflag, size = 0x4, scoped, tag = 'scoped memory for _dense_impl.1']
    %7 = vsyncpa [#allocation3], 0
    // Predicated region
    $region2: #{_dense_impl.1} parent=1 // pred_check
      _
    $region3: #{_dense_impl.1} parent=1 // pred_check_branch
      %9 = sbr.rel (0) target = $region5
    $region4: #{_dense_impl.1} parent=1 // pred_region
      _
    $region5: #{_dense_impl.1} parent=1 // pred_fallthru
      _
    // Predicated region
    $region6: #{_dense_impl.1} parent=1 // pred_check
      _
    $region7: #{_dense_impl.1} parent=1 // pred_check_branch
      %11 = sbr.rel (0) target = $region9
    $region8: #{_dense_impl.1} parent=1 // pred_region
      _
    $region9: #{_dense_impl.1} parent=1 // pred_fallthru
      _
    %v12 = vld [vmem:[%s0] sm:$0xff]
    %v13 = vld [vmem:[%s1] sm:$0xff]
    %v14 = vld [vmem:[%s1 + $0x8] sm:$0xff]
    %v15 = vld [vmem:[%s1 + $0x10] sm:$0xff]
    %v16 = vld [vmem:[%s1 + $0x18] sm:$0xff]
    %vm17 = vcmask 261120
    %v19 = vsel %vm17, %v12, 0
    %21 = vmatprep.subr.mxu0 0.0
    %22 = vmatpush1.msra.mxu0 0.0
    %23 = vmatprep.subr.mxu0 0.0
    %24 = vmatpush1.msra.mxu0 0.0
    %25 = vmatprep.subr.mxu0 0.0
    %26 = vmatpush1.msra.mxu0 0.0
    %27 = vmatprep.subr.mxu0 0.0
    %28 = vmatpush1.msra.mxu0 0.0
    %29 = vmatprep.subr.mxu0 0.0
    %30 = vmatpush1.msra.mxu0 0.0
    %31 = vmatprep.subr.mxu0 0.0
    %32 = vmatpush1.msra.mxu0 0.0
    %33 = vmatprep.subr.mxu0 0.0
    %34 = vmatpush1.msra.mxu0 0.0
    %35 = vmatprep.subr.mxu0 0.0
    %36 = vmatpush1.msra.mxu0 0.0
    %37 = vmatprep.subr.mxu0 0.0
    %38 = vmatpush1.msra.mxu0 0.0
    %39 = vmatprep.subr.mxu0 0.0
    %40 = vmatpush1.msra.mxu0 0.0
    %41 = vmatprep.subr.mxu0 0.0
    %42 = vmatpush1.msra.mxu0 0.0
    %43 = vmatprep.subr.mxu0 0.0
    %44 = vmatpush1.msra.mxu0 0.0
    %45 = vmatprep.subr.mxu0 0.0
    %46 = vmatpush1.msra.mxu0 %v16
    %47 = vmatprep.subr.mxu0 0.0
    %48 = vmatpush1.msra.mxu0 %v15
    %49 = vmatprep.subr.mxu0 0.0
    %50 = vmatpush1.msra.mxu0 %v14
    %51 = vmatprep.subr.mxu0 0.0
    %52 = vmatpush1.msra.mxu0 %v13
    %53 = vmatprep.subr.mxu0 0.0
    %54 = vmatpush2.msra.mxu0 0.0
    %55 = vmatprep.subr.mxu0 0.0
    %56 = vmatpush2.msra.mxu0 0.0
    %57 = vmatprep.subr.mxu0 0.0
    %58 = vmatpush2.msra.mxu0 0.0
    %59 = vmatprep.subr.mxu0 0.0
    %60 = vmatpush2.msra.mxu0 0.0
    %61 = vmatprep.subr.mxu0 0.0
    %62 = vmatpush2.msra.mxu0 0.0
    %63 = vmatprep.subr.mxu0 0.0
    %64 = vmatpush2.msra.mxu0 0.0
    %65 = vmatprep.subr.mxu0 0.0
    %66 = vmatpush2.msra.mxu0 0.0
    %67 = vmatprep.subr.mxu0 0.0
    %68 = vmatpush2.msra.mxu0 0.0
    %69 = vmatprep.subr.mxu0 0.0
    %70 = vmatpush2.msra.mxu0 0.0
    %71 = vmatprep.subr.mxu0 0.0
    %72 = vmatpush2.msra.mxu0 0.0
    %73 = vmatprep.subr.mxu0 0.0
    %74 = vmatpush2.msra.mxu0 0.0
    %75 = vmatprep.subr.mxu0 0.0
    %76 = vmatpush2.msra.mxu0 0.0
    %77 = vmatprep.subr.mxu0 0.0
    %78 = vmatpush2.msra.mxu0 0.0
    %79 = vmatprep.subr.mxu0 0.0
    %80 = vmatpush2.msra.mxu0 0.0
    %81 = vmatprep.subr.mxu0 0.0
    %82 = vmatpush2.msra.mxu0 0.0
    %83 = vmatprep.subr.mxu0 0.0
    %84 = vmatpush2.msra.mxu0 0.0
    %85 = vmatprep.mubr.f32.mxu0 0.0
    %86 = vmatmul.mubr.f32.gmra.mxu0 %v19
    %v87 = vpop.f32.mrf.mxu0
    %v88 = vadd.f32 0.0, %v87
    %v89 = vpop.f32.mrf.mxu0
    %90 = vdwg.mxu0
    %vm91 = vcmask 130048
    %92 = vst.msk [vmem:[#allocation2] sm:$0xff] %vm91, %v88
    // Predicated region
    $region10: #{_dense_impl.1} parent=1 // pred_check
      _
    $region11: #{_dense_impl.1} parent=1 // pred_check_branch
      %94 = sbr.rel (0) target = $region13
    $region12: #{_dense_impl.1} parent=1 // pred_region
      %s96 = ssub.s32 128, 128
      %97 = vsyncadd [#allocation3], %s96
      %s99 = sshll.u32 [#allocation2], 4
      %s100 = int_to_ptr.vmem [resolvable:$true] %s99
      %102 = dma.vmem_to_hbm [thread:$0]  %s100, 128, %s2, [#allocation3]
    $region13: #{_dense_impl.1} parent=1 // pred_fallthru
      _
    // Predicated region
    $region14: #{_dense_impl.1} parent=1 // pred_check
      _
    $region15: #{_dense_impl.1} parent=1 // pred_check_branch
      %104 = sbr.rel (0) target = $region17
    $region16: #{_dense_impl.1} parent=1 // pred_region
      %105 = dma.done [#allocation3], 128
    $region17: #{_dense_impl.1} parent=1 // pred_fallthru
      _
    %106 = vsyncpa [#allocation3], 1

</llo_original>
